<compile_context>
chip_gen: v7x
topology: tpu7x:2x2x1
jax: 0.10.0
libtpu: 0.0.40
codegen_flags: <defaults>
</compile_context>

<pallas_src>
import functools

import jax
import jax.numpy as jnp
from jax.experimental import pallas as pl
from jax.experimental.pallas import tpu as pltpu


# ----------------------------- Pallas kernels ------------------------------

def _heads_attention(q, k, v, heads, dim_head):
    """Per-head softmax attention on lane-dense (N, H*Dh) q / (M, H*Dh) k, v.

    q is already scaled by dim_head**-0.5 (folded into wq in the wrapper).
    Returns the attention output already in 'n (h d)' layout: (N, H*Dh).
    """
    outs = []
    for h in range(heads):                      # static unrolled loop (small H)
        lo = h * dim_head
        qh = q[:, lo:lo + dim_head]             # (N, Dh)  static lane slice
        kh = k[:, lo:lo + dim_head]             # (M, Dh)
        vh = v[:, lo:lo + dim_head]             # (M, Dh)
        # Contract the last dims directly on the MXU -- avoids an explicit
        # k.T (XLU relayout) of a lane-padded tile.
        s = jax.lax.dot_general(
            qh, kh, (((1,), (1,)), ((), ())),
            preferred_element_type=jnp.float32)                  # (N, M)
        s = s - jnp.max(s, axis=-1, keepdims=True)               # stable softmax
        p = jnp.exp(s)
        # EUP approximate reciprocal; fold 1/l into the PV result as a row
        # scale instead of scaling the full (N, M) probability matrix.
        inv_l = pl.reciprocal(jnp.sum(p, axis=-1, keepdims=True), approx=True)
        o_h = jnp.dot(p, vh, preferred_element_type=jnp.float32) * inv_l
        outs.append(o_h)                                         # (N, Dh)
    return jnp.concatenate(outs, axis=-1)                        # (N, H*Dh)


def _self_attn_kernel(x_ref, wqkv_ref, wo_ref, bo_ref, o_ref, *,
                      heads, dim_head):
    """Fused self-attention forward for one batch element."""
    inner = heads * dim_head
    x = x_ref[...]                                               # (N, D)
    # Single fused projection: q | k | v in one lane-dense GEMM.
    qkv = jnp.dot(x, wqkv_ref[...], preferred_element_type=jnp.float32)
    q = qkv[:, :inner]
    k = qkv[:, inner:2 * inner]
    v = qkv[:, 2 * inner:]
    o = _heads_attention(q, k, v, heads, dim_head)               # (N, inner)
    y = jnp.dot(o, wo_ref[...], preferred_element_type=jnp.float32)
    y = y + bo_ref[...]                                          # (1, D) bcast
    o_ref[...] = y.astype(o_ref.dtype)


def _cross_attn_kernel(x_ref, ctx_ref, wq_ref, wkv_ref, wo_ref, bo_ref,
                       o_ref, *, heads, dim_head):
    """Fused cross-attention forward (context != x) for one batch element."""
    inner = heads * dim_head
    q = jnp.dot(x_ref[...], wq_ref[...], preferred_element_type=jnp.float32)
    kv = jnp.dot(ctx_ref[...], wkv_ref[...], preferred_element_type=jnp.float32)
    k = kv[:, :inner]
    v = kv[:, inner:]
    o = _heads_attention(q, k, v, heads, dim_head)               # (N, inner)
    y = jnp.dot(o, wo_ref[...], preferred_element_type=jnp.float32)
    y = y + bo_ref[...]
    o_ref[...] = y.astype(o_ref.dtype)


def _cross_self_attn_kernel(x_ref, ctx_ref, wqkv_ref, wkv_ref, wo_ref, bo_ref,
                            o_ref, *, heads, dim_head):
    """kv_include_self path: keys/values come from cat([x, context], seq).

    The concat happens on the *projected* kv inside the kernel (sublane
    concat in vregs), so the wrapper never materializes cat(x, ctx) in HBM.
    x's q- and kv-projections share a single fused (D, 3*inner) GEMM.
    """
    inner = heads * dim_head
    xp = jnp.dot(x_ref[...], wqkv_ref[...],
                 preferred_element_type=jnp.float32)             # (N, 3*inner)
    q = xp[:, :inner]
    kv_x = xp[:, inner:]                                         # (N, 2*inner)
    kv_c = jnp.dot(ctx_ref[...], wkv_ref[...],
                   preferred_element_type=jnp.float32)           # (M, 2*inner)
    kv = jnp.concatenate([kv_x, kv_c], axis=0)                   # (N+M, 2*inner)
    k = kv[:, :inner]
    v = kv[:, inner:]
    o = _heads_attention(q, k, v, heads, dim_head)               # (N, inner)
    y = jnp.dot(o, wo_ref[...], preferred_element_type=jnp.float32)
    y = y + bo_ref[...]
    o_ref[...] = y.astype(o_ref.dtype)


# ----------------------------- CTAttention ---------------------------------

def init_ct_attention_params(key, dim, heads, dim_head, dtype=jnp.float32):
    inner = heads * dim_head
    k1, k2, k3, k4 = jax.random.split(key, 4)
    std = 0.02
    return {
        # stored as (in_features, out_features) so forward is x @ W
        "wq": (jax.random.normal(k1, (dim, inner)) * std).astype(dtype),
        "wkv": (jax.random.normal(k2, (dim, 2 * inner)) * std).astype(dtype),
        "wo": (jax.random.normal(k3, (inner, dim)) * std).astype(dtype),
        "bo": (jax.random.normal(k4, (dim,)) * std).astype(dtype),
    }


def ct_attention_forward(x, params, heads, dim_head, context=None,
                         kv_include_self=False):
    B, N, D = x.shape
    inner = heads * dim_head
    scale = dim_head ** (-0.5)
    sq = pl.Squeezed()
    bo2d = params["bo"].reshape(1, D)
    wq_scaled = params["wq"] * scale       # fold softmax scale into wq (free)

    cparams = pltpu.CompilerParams(dimension_semantics=("parallel",))
    x_spec = pl.BlockSpec((sq, N, D), lambda b: (b, 0, 0))
    out_spec = pl.BlockSpec((sq, N, D), lambda b: (b, 0, 0))
    out_shape = jax.ShapeDtypeStruct((B, N, D), x.dtype)

    def w_spec(shape):
        return pl.BlockSpec(shape, lambda b: (0, 0))

    if context is None and not kv_include_self:
        # Self-attention fast path: single fused qkv projection weight.
        wqkv = jnp.concatenate([wq_scaled, params["wkv"]], axis=1)  # (D, 3*inner)
        kern = functools.partial(_self_attn_kernel, heads=heads,
                                 dim_head=dim_head)
        return pl.pallas_call(
            kern,
            out_shape=out_shape,
            grid=(B,),
            in_specs=[x_spec,
                      w_spec((D, 3 * inner)),
                      w_spec((inner, D)),
                      w_spec((1, D))],
            out_specs=out_spec,
            compiler_params=cparams,
        )(x, wqkv, params["wo"], bo2d)

    ctx = x if context is None else context
    M, Dc = ctx.shape[1], ctx.shape[2]
    ctx_spec = pl.BlockSpec((sq, M, Dc), lambda b: (b, 0, 0))

    if kv_include_self:
        # Avoid the HBM-level cat(x, ctx): project separately, concat in-kernel.
        wqkv = jnp.concatenate([wq_scaled, params["wkv"]], axis=1)  # (D, 3*inner)
        kern = functools.partial(_cross_self_attn_kernel, heads=heads,
                                 dim_head=dim_head)
        return pl.pallas_call(
            kern,
            out_shape=out_shape,
            grid=(B,),
            in_specs=[x_spec, ctx_spec,
                      w_spec((D, 3 * inner)),
                      w_spec((Dc, 2 * inner)),
                      w_spec((inner, D)),
                      w_spec((1, D))],
            out_specs=out_spec,
            compiler_params=cparams,
        )(x, ctx, wqkv, params["wkv"], params["wo"], bo2d)

    # Plain cross-attention path.
    kern = functools.partial(_cross_attn_kernel, heads=heads, dim_head=dim_head)
    return pl.pallas_call(
        kern,
        out_shape=out_shape,
        grid=(B,),
        in_specs=[x_spec, ctx_spec,
                  w_spec((D, inner)),
                  w_spec((Dc, 2 * inner)),
                  w_spec((inner, D)),
                  w_spec((1, D))],
        out_specs=out_spec,
        compiler_params=cparams,
    )(x, ctx, wq_scaled, params["wkv"], params["wo"], bo2d)


def ct_attention_reference(x, params, heads, dim_head, context=None,
                           kv_include_self=False):
    """Pure-JAX reference for validation (mirrors the PyTorch forward)."""
    B, N, D = x.shape
    inner = heads * dim_head
    scale = dim_head ** (-0.5)
    ctx = x if context is None else context
    if kv_include_self:
        ctx = jnp.concatenate([x, ctx], axis=1)
    M = ctx.shape[1]
    q = x @ params["wq"]
    kv = ctx @ params["wkv"]
    k, v = kv[..., :inner], kv[..., inner:]
    rs = lambda t, s: t.reshape(B, s, heads, dim_head).transpose(0, 2, 1, 3)
    q, k, v = rs(q, N), rs(k, M), rs(v, M)
    dots = jnp.einsum("bhid,bhjd->bhij", q, k) * scale
    attn = jax.nn.softmax(dots, axis=-1)
    o = jnp.einsum("bhij,bhjd->bhid", attn, v)
    o = o.transpose(0, 2, 1, 3).reshape(B, N, inner)
    return o @ params["wo"] + params["bo"]


# --------------------------------- main -------------------------------------

if __name__ == "__main__":
    B, N, DIM = 2, 8, 32
    M_CTX = 16
    HEADS, DIM_HEAD = 4, 32

    key = jax.random.PRNGKey(0)
    kx, kc, kp = jax.random.split(key, 3)
    x = jax.random.normal(kx, (B, N, DIM), dtype=jnp.float32)
    ctx = jax.random.normal(kc, (B, M_CTX, DIM), dtype=jnp.float32)
    params = init_ct_attention_params(kp, DIM, HEADS, DIM_HEAD)

    # 1) Self-attention path (fused qkv projection).
    out = ct_attention_forward(x, params, HEADS, DIM_HEAD)
    out = jax.block_until_ready(out)
    ref = ct_attention_reference(x, params, HEADS, DIM_HEAD)
    assert out.shape == (B, N, DIM)
    assert jnp.allclose(out, ref, atol=1e-3, rtol=1e-3), "self-attn mismatch"

    # 2) Cross-attention path (context with different sequence length).
    out_x = ct_attention_forward(x, params, HEADS, DIM_HEAD, context=ctx)
    out_x = jax.block_until_ready(out_x)
    ref_x = ct_attention_reference(x, params, HEADS, DIM_HEAD, context=ctx)
    assert out_x.shape == (B, N, DIM)
    assert jnp.allclose(out_x, ref_x, atol=1e-3, rtol=1e-3), "cross-attn mismatch"

    # 3) Cross-attention with kv_include_self (in-kernel kv concat).
    out_c = ct_attention_forward(x, params, HEADS, DIM_HEAD,
                                 context=ctx, kv_include_self=True)
    out_c = jax.block_until_ready(out_c)
    ref_c = ct_attention_reference(x, params, HEADS, DIM_HEAD,
                                   context=ctx, kv_include_self=True)
    assert out_c.shape == (B, N, DIM)
    assert jnp.allclose(out_c, ref_c, atol=1e-3, rtol=1e-3), \
        "cross-attn(include_self) mismatch"

    print("KERNEL_OK")
</pallas_src>

<mosaic_0001>
module attributes {stable_mosaic.version = 11 : i64} {
  func.func @_self_attn_kernel(%arg0: i32, %arg1: memref<1x8x32xf32, #tpu.memory_space<vmem>>, %arg2: memref<32x384xf32, #tpu.memory_space<vmem>>, %arg3: memref<128x32xf32, #tpu.memory_space<vmem>>, %arg4: memref<1x32xf32, #tpu.memory_space<vmem>>, %arg5: memref<1x8x32xf32, #tpu.memory_space<vmem>>) attributes {dimension_semantics = [#tpu.dimension_semantics<parallel>], iteration_bounds = array<i64: 2>, scalar_prefetch = 0 : i64, scratch_operands = 0 : i64, tpu.core_type = #tpu.core_type<tc>, window_params = [{transform_indices = @transform_0, window_bounds = array<i64: 1, 8, 32>}, {pipeline_mode = #tpu.pipeline_mode<synchronous>, transform_indices = @transform_1, window_bounds = array<i64: 32, 384>}, {pipeline_mode = #tpu.pipeline_mode<synchronous>, transform_indices = @transform_2, window_bounds = array<i64: 128, 32>}, {pipeline_mode = #tpu.pipeline_mode<synchronous>, transform_indices = @transform_3, window_bounds = array<i64: 1, 32>}, {transform_indices = @transform_4, window_bounds = array<i64: 1, 8, 32>}]} {
    %c0 = arith.constant 0 : index
    %c0_0 = arith.constant 0 : index
    %c0_1 = arith.constant 0 : index
    %0 = vector.load %arg1[%c0, %c0_0, %c0_1] : memref<1x8x32xf32, #tpu.memory_space<vmem>>, vector<1x8x32xf32>
    %1 = vector.shape_cast %0 : vector<1x8x32xf32> to vector<8x32xf32>
    %c0_2 = arith.constant 0 : index
    %c0_3 = arith.constant 0 : index
    %2 = vector.load %arg2[%c0_2, %c0_3] : memref<32x384xf32, #tpu.memory_space<vmem>>, vector<32x384xf32>
    %cst = arith.constant dense<0.000000e+00> : vector<8x384xf32>
    %3 = tpu.matmul %1, %2, %cst {dimension_numbers = #tpu.dot_dimension_numbers<[1], [0], [0], [1], [0, 0, 1, 1], [], []>} : vector<8x32xf32>, vector<32x384xf32>, vector<8x384xf32> -> vector<8x384xf32>
    %4 = vector.extract_strided_slice %3 {offsets = [0, 0], sizes = [8, 128], strides = [1, 1]} : vector<8x384xf32> to vector<8x128xf32>
    %5 = vector.extract_strided_slice %3 {offsets = [0, 128], sizes = [8, 128], strides = [1, 1]} : vector<8x384xf32> to vector<8x128xf32>
    %6 = vector.extract_strided_slice %3 {offsets = [0, 256], sizes = [8, 128], strides = [1, 1]} : vector<8x384xf32> to vector<8x128xf32>
    %7 = vector.extract_strided_slice %4 {offsets = [0, 0], sizes = [8, 32], strides = [1, 1]} : vector<8x128xf32> to vector<8x32xf32>
    %8 = vector.extract_strided_slice %5 {offsets = [0, 0], sizes = [8, 32], strides = [1, 1]} : vector<8x128xf32> to vector<8x32xf32>
    %9 = vector.extract_strided_slice %6 {offsets = [0, 0], sizes = [8, 32], strides = [1, 1]} : vector<8x128xf32> to vector<8x32xf32>
    %cst_4 = arith.constant dense<0.000000e+00> : vector<8x8xf32>
    %10 = tpu.matmul %7, %8, %cst_4 {dimension_numbers = #tpu.dot_dimension_numbers<[1], [1], [0], [0], [0, 0, 1, 0], [], []>} : vector<8x32xf32>, vector<8x32xf32>, vector<8x8xf32> -> vector<8x8xf32>
    %cst_5 = arith.constant dense<0xFF800000> : vector<8xf32>
    %11 = vector.multi_reduction <maximumf>, %10, %cst_5 [1] : vector<8x8xf32> to vector<8xf32>
    %12 = vector.shape_cast %11 : vector<8xf32> to vector<8x1xf32>
    %13 = vector.broadcast %12 : vector<8x1xf32> to vector<8x8xf32>
    %14 = arith.subf %10, %13 : vector<8x8xf32>
    %15 = math.exp %14 : vector<8x8xf32>
    %cst_6 = arith.constant dense<0.000000e+00> : vector<8xf32>
    %16 = vector.multi_reduction <add>, %15, %cst_6 [1] : vector<8x8xf32> to vector<8xf32>
    %17 = vector.shape_cast %16 : vector<8xf32> to vector<8x1xf32>
    %18 = tpu.reciprocal %17 {approx = true} : vector<8x1xf32> -> vector<8x1xf32>
    %cst_7 = arith.constant dense<0.000000e+00> : vector<8x32xf32>
    %19 = tpu.matmul %15, %9, %cst_7 {dimension_numbers = #tpu.dot_dimension_numbers<[1], [0], [0], [1], [0, 0, 1, 1], [], []>} : vector<8x8xf32>, vector<8x32xf32>, vector<8x32xf32> -> vector<8x32xf32>
    %20 = vector.broadcast %18 : vector<8x1xf32> to vector<8x32xf32>
    %21 = arith.mulf %19, %20 : vector<8x32xf32>
    %22 = vector.extract_strided_slice %4 {offsets = [0, 32], sizes = [8, 32], strides = [1, 1]} : vector<8x128xf32> to vector<8x32xf32>
    %23 = vector.extract_strided_slice %5 {offsets = [0, 32], sizes = [8, 32], strides = [1, 1]} : vector<8x128xf32> to vector<8x32xf32>
    %24 = vector.extract_strided_slice %6 {offsets = [0, 32], sizes = [8, 32], strides = [1, 1]} : vector<8x128xf32> to vector<8x32xf32>
    %cst_8 = arith.constant dense<0.000000e+00> : vector<8x8xf32>
    %25 = tpu.matmul %22, %23, %cst_8 {dimension_numbers = #tpu.dot_dimension_numbers<[1], [1], [0], [0], [0, 0, 1, 0], [], []>} : vector<8x32xf32>, vector<8x32xf32>, vector<8x8xf32> -> vector<8x8xf32>
    %cst_9 = arith.constant dense<0xFF800000> : vector<8xf32>
    %26 = vector.multi_reduction <maximumf>, %25, %cst_9 [1] : vector<8x8xf32> to vector<8xf32>
    %27 = vector.shape_cast %26 : vector<8xf32> to vector<8x1xf32>
    %28 = vector.broadcast %27 : vector<8x1xf32> to vector<8x8xf32>
    %29 = arith.subf %25, %28 : vector<8x8xf32>
    %30 = math.exp %29 : vector<8x8xf32>
    %cst_10 = arith.constant dense<0.000000e+00> : vector<8xf32>
    %31 = vector.multi_reduction <add>, %30, %cst_10 [1] : vector<8x8xf32> to vector<8xf32>
    %32 = vector.shape_cast %31 : vector<8xf32> to vector<8x1xf32>
    %33 = tpu.reciprocal %32 {approx = true} : vector<8x1xf32> -> vector<8x1xf32>
    %cst_11 = arith.constant dense<0.000000e+00> : vector<8x32xf32>
    %34 = tpu.matmul %30, %24, %cst_11 {dimension_numbers = #tpu.dot_dimension_numbers<[1], [0], [0], [1], [0, 0, 1, 1], [], []>} : vector<8x8xf32>, vector<8x32xf32>, vector<8x32xf32> -> vector<8x32xf32>
    %35 = vector.broadcast %33 : vector<8x1xf32> to vector<8x32xf32>
    %36 = arith.mulf %34, %35 : vector<8x32xf32>
    %37 = vector.extract_strided_slice %4 {offsets = [0, 64], sizes = [8, 32], strides = [1, 1]} : vector<8x128xf32> to vector<8x32xf32>
    %38 = vector.extract_strided_slice %5 {offsets = [0, 64], sizes = [8, 32], strides = [1, 1]} : vector<8x128xf32> to vector<8x32xf32>
    %39 = vector.extract_strided_slice %6 {offsets = [0, 64], sizes = [8, 32], strides = [1, 1]} : vector<8x128xf32> to vector<8x32xf32>
    %cst_12 = arith.constant dense<0.000000e+00> : vector<8x8xf32>
    %40 = tpu.matmul %37, %38, %cst_12 {dimension_numbers = #tpu.dot_dimension_numbers<[1], [1], [0], [0], [0, 0, 1, 0], [], []>} : vector<8x32xf32>, vector<8x32xf32>, vector<8x8xf32> -> vector<8x8xf32>
    %cst_13 = arith.constant dense<0xFF800000> : vector<8xf32>
    %41 = vector.multi_reduction <maximumf>, %40, %cst_13 [1] : vector<8x8xf32> to vector<8xf32>
    %42 = vector.shape_cast %41 : vector<8xf32> to vector<8x1xf32>
    %43 = vector.broadcast %42 : vector<8x1xf32> to vector<8x8xf32>
    %44 = arith.subf %40, %43 : vector<8x8xf32>
    %45 = math.exp %44 : vector<8x8xf32>
    %cst_14 = arith.constant dense<0.000000e+00> : vector<8xf32>
    %46 = vector.multi_reduction <add>, %45, %cst_14 [1] : vector<8x8xf32> to vector<8xf32>
    %47 = vector.shape_cast %46 : vector<8xf32> to vector<8x1xf32>
    %48 = tpu.reciprocal %47 {approx = true} : vector<8x1xf32> -> vector<8x1xf32>
    %cst_15 = arith.constant dense<0.000000e+00> : vector<8x32xf32>
    %49 = tpu.matmul %45, %39, %cst_15 {dimension_numbers = #tpu.dot_dimension_numbers<[1], [0], [0], [1], [0, 0, 1, 1], [], []>} : vector<8x8xf32>, vector<8x32xf32>, vector<8x32xf32> -> vector<8x32xf32>
    %50 = vector.broadcast %48 : vector<8x1xf32> to vector<8x32xf32>
    %51 = arith.mulf %49, %50 : vector<8x32xf32>
    %52 = vector.extract_strided_slice %4 {offsets = [0, 96], sizes = [8, 32], strides = [1, 1]} : vector<8x128xf32> to vector<8x32xf32>
    %53 = vector.extract_strided_slice %5 {offsets = [0, 96], sizes = [8, 32], strides = [1, 1]} : vector<8x128xf32> to vector<8x32xf32>
    %54 = vector.extract_strided_slice %6 {offsets = [0, 96], sizes = [8, 32], strides = [1, 1]} : vector<8x128xf32> to vector<8x32xf32>
    %cst_16 = arith.constant dense<0.000000e+00> : vector<8x8xf32>
    %55 = tpu.matmul %52, %53, %cst_16 {dimension_numbers = #tpu.dot_dimension_numbers<[1], [1], [0], [0], [0, 0, 1, 0], [], []>} : vector<8x32xf32>, vector<8x32xf32>, vector<8x8xf32> -> vector<8x8xf32>
    %cst_17 = arith.constant dense<0xFF800000> : vector<8xf32>
    %56 = vector.multi_reduction <maximumf>, %55, %cst_17 [1] : vector<8x8xf32> to vector<8xf32>
    %57 = vector.shape_cast %56 : vector<8xf32> to vector<8x1xf32>
    %58 = vector.broadcast %57 : vector<8x1xf32> to vector<8x8xf32>
    %59 = arith.subf %55, %58 : vector<8x8xf32>
    %60 = math.exp %59 : vector<8x8xf32>
    %cst_18 = arith.constant dense<0.000000e+00> : vector<8xf32>
    %61 = vector.multi_reduction <add>, %60, %cst_18 [1] : vector<8x8xf32> to vector<8xf32>
    %62 = vector.shape_cast %61 : vector<8xf32> to vector<8x1xf32>
    %63 = tpu.reciprocal %62 {approx = true} : vector<8x1xf32> -> vector<8x1xf32>
    %cst_19 = arith.constant dense<0.000000e+00> : vector<8x32xf32>
    %64 = tpu.matmul %60, %54, %cst_19 {dimension_numbers = #tpu.dot_dimension_numbers<[1], [0], [0], [1], [0, 0, 1, 1], [], []>} : vector<8x8xf32>, vector<8x32xf32>, vector<8x32xf32> -> vector<8x32xf32>
    %65 = vector.broadcast %63 : vector<8x1xf32> to vector<8x32xf32>
    %66 = arith.mulf %64, %65 : vector<8x32xf32>
    %67 = tpu.concatenate %21, %36, %51, %66 in 1 : vector<8x32xf32>, vector<8x32xf32>, vector<8x32xf32>, vector<8x32xf32> -> vector<8x128xf32>
    %c0_20 = arith.constant 0 : index
    %c0_21 = arith.constant 0 : index
    %68 = vector.load %arg3[%c0_20, %c0_21] : memref<128x32xf32, #tpu.memory_space<vmem>>, vector<128x32xf32>
    %cst_22 = arith.constant dense<0.000000e+00> : vector<8x32xf32>
    %69 = tpu.matmul %67, %68, %cst_22 {dimension_numbers = #tpu.dot_dimension_numbers<[1], [0], [0], [1], [0, 0, 1, 1], [], []>} : vector<8x128xf32>, vector<128x32xf32>, vector<8x32xf32> -> vector<8x32xf32>
    %c0_23 = arith.constant 0 : index
    %c0_24 = arith.constant 0 : index
    %70 = vector.load %arg4[%c0_23, %c0_24] : memref<1x32xf32, #tpu.memory_space<vmem>>, vector<1x32xf32>
    %71 = vector.broadcast %70 : vector<1x32xf32> to vector<8x32xf32>
    %72 = arith.addf %69, %71 : vector<8x32xf32>
    %c0_25 = arith.constant 0 : index
    %c0_26 = arith.constant 0 : index
    %c0_27 = arith.constant 0 : index
    %73 = vector.load %arg5[%c0_25, %c0_26, %c0_27] : memref<1x8x32xf32, #tpu.memory_space<vmem>>, vector<1x8x32xf32>
    %74 = vector.shape_cast %73 : vector<1x8x32xf32> to vector<8x32xf32>
    %75 = vector.shape_cast %72 : vector<8x32xf32> to vector<1x8x32xf32>
    tpu.vector_store %arg5[%c0_25, %c0_26, %c0_27], %75 {strides = array<i32>} : memref<1x8x32xf32, #tpu.memory_space<vmem>>, vector<1x8x32xf32>,
    return
  }
  func.func @transform_0(%arg0: i32) -> (i32, i32, i32) {
    %c0_i32 = arith.constant 0 : i32
    %c0_i32_0 = arith.constant 0 : i32
    %c0_i32_1 = arith.constant 0 : i32
    return %arg0, %c0_i32, %c0_i32_0 : i32, i32, i32
  }
  func.func @transform_1(%arg0: i32) -> (i32, i32) {
    %c0_i32 = arith.constant 0 : i32
    %c0_i32_0 = arith.constant 0 : i32
    %c0_i32_1 = arith.constant 0 : i32
    return %c0_i32, %c0_i32_0 : i32, i32
  }
  func.func @transform_2(%arg0: i32) -> (i32, i32) {
    %c0_i32 = arith.constant 0 : i32
    %c0_i32_0 = arith.constant 0 : i32
    %c0_i32_1 = arith.constant 0 : i32
    return %c0_i32, %c0_i32_0 : i32, i32
  }
  func.func @transform_3(%arg0: i32) -> (i32, i32) {
    %c0_i32 = arith.constant 0 : i32
    %c0_i32_0 = arith.constant 0 : i32
    %c0_i32_1 = arith.constant 0 : i32
    return %c0_i32, %c0_i32_0 : i32, i32
  }
  func.func @transform_4(%arg0: i32) -> (i32, i32, i32) {
    %c0_i32 = arith.constant 0 : i32
    %c0_i32_0 = arith.constant 0 : i32
    %c0_i32_1 = arith.constant 0 : i32
    return %arg0, %c0_i32, %c0_i32_0 : i32, i32, i32
  }
}

</mosaic_0001>

<llo_original>
// kernel: tpu_custom_call.1
$region0: #{tpu_custom_call.1}
  #allocation0 [shape = 'u32[]', space=smem, size = 0x4, offset = 0x4, fixed_abs, tag = 'smem constant byte address 0x4 - core index']
  #allocation1 [shape = 'u32[144,128]{1,0:T(1,128)}', space=vmem, size = 0x12000, scoped, tag = 'internal scratch']
  %s0 = inlined_call_operand.vmem [shape: f32[2,8,32], index: 0, kind: input, shape index: {}]
  %s1 = inlined_call_operand.vmem [shape: f32[32,384], index: 1, kind: input, shape index: {}]
  %s2 = inlined_call_operand.vmem [shape: f32[128,32], index: 2, kind: input, shape index: {}]
  %s3 = inlined_call_operand.vmem [shape: f32[1,32], index: 3, kind: input, shape index: {}]
  %s4 = inlined_call_operand.hbm [shape: f32[2,8,32], index: 4, kind: output, shape index: {}]
  %s5 = sld [smem:[#allocation0]]
  $region49: #{tpu_custom_call.1} parent=0
    _
  %s7 = ssub.s32 1, %s5
  %s8 = scalar_select 0, %s7, %s5
  $region1: #{tpu_custom_call.1} parent=0
    #allocation2 [shape = 'u8[8192]{0}', space=vmem, size = 0x2000, scoped, tag = 'output window, operand 0']
    #allocation3 [shape = 's32[2]{0}', space=sflag, size = 0x8, scoped, tag = 'scoped memory for tpu_custom_call.1']
    %9 = vsyncpa [#allocation3], 0
    %s10 = scalar_lea.sflag [#allocation3], 1
    %11 = vsyncpa %s10, 0
    loop: start=0, step=1, limit=4
    $region2: #{tpu_custom_call.1} parent=1 // loop_pre_header
      _
    $region3: #{tpu_custom_call.1} parent=1 // loop_header
      %s13 = sphi 0, %s17
      %p14 = scmp.ge.s32.totalorder %s13, 4
      %s23 = sphi 0, %s25
      %s26 = sphi 0, %s23
      %s27 = sphi 0, %s26
      %s43 = sphi 0, %s27
      %s47 = sphi 0, %s47
      %s49 = sphi 0, %s47
      %s50 = sphi 0, %s49
      %s64 = sphi 0, %s50
      %s68 = sphi 0, %s68
      %s70 = sphi 0, %s68
      %s71 = sphi 0, %s70
      %s85 = sphi 0, %s71
      %s89 = sphi 0, %s89
      %s91 = sphi 0, %s89
      %s92 = sphi 0, %s91
      %s106 = sphi 0, %s92
      %s112 = sphi 0, %s114
      %s115 = sphi 0, %s112
      %s116 = sphi 0, %s115
      %s132 = sphi 0, %s116
    $region4: #{tpu_custom_call.1} parent=1 // loop_header_branch
      %16 = sbr.rel (%p14) target = $region8
    $region5: #{tpu_custom_call.1} parent=1 // loop_body
      %s18 = ssub.s32 %s13, 1
      %s19 = ssub.s32 %s13, 2
      %s20 = sadd.s32 %s13, 1
      %s21 = ssub.s32 %s13, %s20
      %p22 = scmp.eq.s32.totalorder %s21, 0
      %s24 = sadd.s32 %s23, 1
      %s25 = scalar_select %p22, %s23, %s24
      %p28 = pneg %p22
      %p29 = scmp.eq.s32.totalorder %s13, 1
      %p30 = por %p28, %p29
      %p31 = scmp.ne.s32.totalorder %s23, %s26
      %p32 = scmp.eq.s32.totalorder %s13, 0
      %p33 = por %p31, %p32
      %p34 = scmp.ne.s32.totalorder %s23, %s26
      %p35 = scmp.eq.s32.totalorder %s18, 1
      %p36 = por %p34, %p35
      %p37 = scmp.ne.s32.totalorder %s26, %s27
      %p38 = scmp.eq.s32.totalorder %s18, 0
      %p39 = por %p37, %p38
      %p40 = scmp.ne.s32.totalorder %s26, %s27
      %p41 = scmp.eq.s32.totalorder %s19, 1
      %p42 = por %p40, %p41
      %p44 = scmp.ne.s32.totalorder %s27, %s43
      %p45 = scmp.eq.s32.totalorder %s19, 0
      %p46 = por %p44, %p45
      %s48 = sadd.s32 %s47, 1
      %p51 = scmp.eq.s32.totalorder %s13, 1
      %p52 = scmp.ne.s32.totalorder %s47, %s49
      %p53 = scmp.eq.s32.totalorder %s13, 0
      %p54 = por %p52, %p53
      %p55 = scmp.ne.s32.totalorder %s47, %s49
      %p56 = scmp.eq.s32.totalorder %s18, 1
      %p57 = por %p55, %p56
      %p58 = scmp.ne.s32.totalorder %s49, %s50
      %p59 = scmp.eq.s32.totalorder %s18, 0
      %p60 = por %p58, %p59
      %p61 = scmp.ne.s32.totalorder %s49, %s50
      %p62 = scmp.eq.s32.totalorder %s19, 1
      %p63 = por %p61, %p62
      %p65 = scmp.ne.s32.totalorder %s50, %s64
      %p66 = scmp.eq.s32.totalorder %s19, 0
      %p67 = por %p65, %p66
      %s69 = sadd.s32 %s68, 1
      %p72 = scmp.eq.s32.totalorder %s13, 1
      %p73 = scmp.ne.s32.totalorder %s68, %s70
      %p74 = scmp.eq.s32.totalorder %s13, 0
      %p75 = por %p73, %p74
      %p76 = scmp.ne.s32.totalorder %s68, %s70
      %p77 = scmp.eq.s32.totalorder %s18, 1
      %p78 = por %p76, %p77
      %p79 = scmp.ne.s32.totalorder %s70, %s71
      %p80 = scmp.eq.s32.totalorder %s18, 0
      %p81 = por %p79, %p80
      %p82 = scmp.ne.s32.totalorder %s70, %s71
      %p83 = scmp.eq.s32.totalorder %s19, 1
      %p84 = por %p82, %p83
      %p86 = scmp.ne.s32.totalorder %s71, %s85
      %p87 = scmp.eq.s32.totalorder %s19, 0
      %p88 = por %p86, %p87
      %s90 = sadd.s32 %s89, 1
      %p93 = scmp.eq.s32.totalorder %s13, 1
      %p94 = scmp.ne.s32.totalorder %s89, %s91
      %p95 = scmp.eq.s32.totalorder %s13, 0
      %p96 = por %p94, %p95
      %p97 = scmp.ne.s32.totalorder %s89, %s91
      %p98 = scmp.eq.s32.totalorder %s18, 1
      %p99 = por %p97, %p98
      %p100 = scmp.ne.s32.totalorder %s91, %s92
      %p101 = scmp.eq.s32.totalorder %s18, 0
      %p102 = por %p100, %p101
      %p103 = scmp.ne.s32.totalorder %s91, %s92
      %p104 = scmp.eq.s32.totalorder %s19, 1
      %p105 = por %p103, %p104
      %p107 = scmp.ne.s32.totalorder %s92, %s106
      %p108 = scmp.eq.s32.totalorder %s19, 0
      %p109 = por %p107, %p108
      %s110 = ssub.s32 %s13, %s20
      %p111 = scmp.eq.s32.totalorder %s110, 0
      %s113 = sadd.s32 %s112, 1
      %s114 = scalar_select %p111, %s112, %s113
      %p117 = pneg %p111
      %p118 = scmp.eq.s32.totalorder %s13, 1
      %p119 = por %p117, %p118
      %p120 = scmp.ne.s32.totalorder %s112, %s115
      %p121 = scmp.eq.s32.totalorder %s13, 0
      %p122 = por %p120, %p121
      %p123 = scmp.ne.s32.totalorder %s112, %s115
      %p124 = scmp.eq.s32.totalorder %s18, 1
      %p125 = por %p123, %p124
      %p126 = scmp.ne.s32.totalorder %s115, %s116
      %p127 = scmp.eq.s32.totalorder %s18, 0
      %p128 = por %p126, %p127
      %p129 = scmp.ne.s32.totalorder %s115, %s116
      %p130 = scmp.eq.s32.totalorder %s19, 1
      %p131 = por %p129, %p130
      %p133 = scmp.ne.s32.totalorder %s116, %s132
      %p134 = scmp.eq.s32.totalorder %s19, 0
      %p135 = por %p133, %p134
      %p136 = scmp.le.s32.totalorder 1, %s13
      %p137 = scmp.lt.s32.totalorder %s13, 3
      %p138 = pnand %p136, %p137
      %p139 = pneg %p138
      // Predicated region
      $region9: #{tpu_custom_call.1} parent=5 // pred_check
        _
      $region10: #{tpu_custom_call.1} parent=5 // pred_check_branch
        %141 = sbr.rel (%p138) target = $region12
      $region11: #{tpu_custom_call.1} parent=5 // pred_region
        %s142 = ssub.s32 %s13, 1
        // Predicated region
        $region13: #{tpu_custom_call.1} parent=11 // pred_check
          %p143 = pneg %p60
        $region14: #{tpu_custom_call.1} parent=11 // pred_check_branch
          %145 = sbr.rel (%p143) target = $region16
        $region15: #{tpu_custom_call.1} parent=11 // pred_region
          _
        $region16: #{tpu_custom_call.1} parent=11 // pred_fallthru
          _
        // Predicated region
        $region17: #{tpu_custom_call.1} parent=11 // pred_check
          %p146 = pneg %p81
        $region18: #{tpu_custom_call.1} parent=11 // pred_check_branch
          %148 = sbr.rel (%p146) target = $region20
        $region19: #{tpu_custom_call.1} parent=11 // pred_region
          _
        $region20: #{tpu_custom_call.1} parent=11 // pred_fallthru
          _
        // Predicated region
        $region21: #{tpu_custom_call.1} parent=11 // pred_check
          %p149 = pneg %p102
        $region22: #{tpu_custom_call.1} parent=11 // pred_check_branch
          %151 = sbr.rel (%p149) target = $region24
        $region23: #{tpu_custom_call.1} parent=11 // pred_region
          _
        $region24: #{tpu_custom_call.1} parent=11 // pred_fallthru
          _
      $region12: #{tpu_custom_call.1} parent=5 // pred_fallthru
        _
      %p152 = scmp.lt.s32.totalorder %s13, 2
      // Predicated region
      $region25: #{tpu_custom_call.1} parent=5 // pred_check
        %p153 = pneg %p152
      $region26: #{tpu_custom_call.1} parent=5 // pred_check_branch
        %155 = sbr.rel (%p153) target = $region28
      $region27: #{tpu_custom_call.1} parent=5 // pred_region
        // Predicated region
        $region29: #{tpu_custom_call.1} parent=27 // pred_check
          %p156 = pneg %p33
        $region30: #{tpu_custom_call.1} parent=27 // pred_check_branch
          %158 = sbr.rel (%p156) target = $region32
        $region31: #{tpu_custom_call.1} parent=27 // pred_region
          %p159 = scmp.lt.s32.totalorder %s13, 1
          %s160 = scalar_select %p159, %s13, 1
          %s161 = smul.addr %s160, 8
          %s162 = scalar_lea.vmem %s0, %s161
        $region32: #{tpu_custom_call.1} parent=27 // pred_fallthru
          _
      $region28: #{tpu_custom_call.1} parent=5 // pred_fallthru
        _
      %p163 = scmp.le.s32.totalorder 1, %s13
      %p164 = scmp.lt.s32.totalorder %s13, 3
      %p165 = pnand %p163, %p164
      %p166 = pneg %p165
      // Predicated region
      $region33: #{tpu_custom_call.1} parent=5 // pred_check
        _
      $region34: #{tpu_custom_call.1} parent=5 // pred_check_branch
        %168 = sbr.rel (%p165) target = $region36
      $region35: #{tpu_custom_call.1} parent=5 // pred_region
        %s169 = ssub.s32 %s13, 1
        %p170 = scmp.lt.s32.totalorder %s18, 1
        %s171 = scalar_select %p170, %s18, 1
        %s172 = smul.addr %s171, 8
        %s173 = scalar_lea.vmem %s0, %s172
        %p174 = pneg %p39
        %p175 = pneg %p36
        %p176 = pneg %p60
        %p177 = pneg %p57
        %p178 = pneg %p81
        %p179 = pneg %p78
        %p180 = pneg %p102
        %p181 = pneg %p99
        %p182 = pneg %p128
        %p183 = pneg %p125
        %s184 = sand.u32 %s115, 1
        %s185 = scalar_lea.sflag [#allocation3], %s184
        %s186 = sand.u32 %s115, 1
        %s187 = smul.addr %s186, 8
        %s188 = scalar_lea.vmem [#allocation2], %s187
        %p189 = scmp.lt.s32.totalorder %s18, 1
        %s190 = scalar_select %p189, %s18, 1
        %s191 = smul.addr %s190, 8
        %s192 = scalar_lea.vmem %s0, %s191
        %v193 = vld [vmem:[%s192] sm:$0xff]
        %v194 = vld [vmem:[%s1] sm:$0xff]
        %v195 = vld [vmem:[%s1 + $0x8] sm:$0xff]
        %v196 = vld [vmem:[%s1 + $0x10] sm:$0xff]
        %v197 = vld [vmem:[%s1 + $0x18] sm:$0xff]
        %v198 = vld [vmem:[%s1 + $0x20] sm:$0xff]
        %v199 = vld [vmem:[%s1 + $0x28] sm:$0xff]
        %v200 = vld [vmem:[%s1 + $0x30] sm:$0xff]
        %v201 = vld [vmem:[%s1 + $0x38] sm:$0xff]
        %v202 = vld [vmem:[%s1 + $0x40] sm:$0xff]
        %v203 = vld [vmem:[%s1 + $0x48] sm:$0xff]
        %v204 = vld [vmem:[%s1 + $0x50] sm:$0xff]
        %v205 = vld [vmem:[%s1 + $0x58] sm:$0xff]
        %vm206 = vcmask 261120
        %v208 = vsel %vm206, %v193, 0
        %210 = vmatprep.subr.mxu0 %v195
        %211 = vmatpush1.msra.mxu0 %v194
        %212 = vmatprep.subr.mxu0 %v198
        %213 = vmatpush1.msra.mxu0 %v197
        %214 = vmatprep.subr.mxu0 %v201
        %215 = vmatpush1.msra.mxu0 %v200
        %216 = vmatprep.subr.mxu0 %v204
        %217 = vmatpush1.msra.mxu0 %v203
        %218 = vmatprep.subr.mxu0 0.0
        %219 = vmatpush1.msra.mxu0 0.0
        %220 = vmatprep.subr.mxu0 0.0
        %221 = vmatpush1.msra.mxu0 0.0
        %222 = vmatprep.subr.mxu0 0.0
        %223 = vmatpush1.msra.mxu0 0.0
        %224 = vmatprep.subr.mxu0 0.0
        %225 = vmatpush1.msra.mxu0 0.0
        %226 = vmatprep.subr.mxu0 0.0
        %227 = vmatpush1.msra.mxu0 0.0
        %228 = vmatprep.subr.mxu0 0.0
        %229 = vmatpush1.msra.mxu0 0.0
        %230 = vmatprep.subr.mxu0 0.0
        %231 = vmatpush1.msra.mxu0 0.0
        %232 = vmatprep.subr.mxu0 0.0
        %233 = vmatpush1.msra.mxu0 0.0
        %234 = vmatprep.subr.mxu0 0.0
        %235 = vmatpush1.msra.mxu0 0.0
        %236 = vmatprep.subr.mxu0 0.0
        %237 = vmatpush1.msra.mxu0 0.0
        %238 = vmatprep.subr.mxu0 0.0
        %239 = vmatpush1.msra.mxu0 0.0
        %240 = vmatprep.subr.mxu0 0.0
        %241 = vmatpush1.msra.mxu0 0.0
        %242 = vmatprep.subr.mxu0 0.0
        %243 = vmatpush1.msra.mxu0 0.0
        %244 = vmatprep.subr.mxu0 0.0
        %245 = vmatpush1.msra.mxu0 0.0
        %246 = vmatprep.subr.mxu0 0.0
        %247 = vmatpush1.msra.mxu0 0.0
        %248 = vmatprep.subr.mxu0 0.0
        %249 = vmatpush1.msra.mxu0 0.0
        %250 = vmatprep.subr.mxu0 0.0
        %251 = vmatpush1.msra.mxu0 0.0
        %252 = vmatprep.subr.mxu0 0.0
        %253 = vmatpush1.msra.mxu0 0.0
        %254 = vmatprep.subr.mxu0 0.0
        %255 = vmatpush1.msra.mxu0 0.0
        %256 = vmatprep.subr.mxu0 0.0
        %257 = vmatpush1.msra.mxu0 0.0
        %258 = vmatprep.subr.mxu0 0.0
        %259 = vmatpush1.msra.mxu0 0.0
        %260 = vmatprep.subr.mxu0 0.0
        %261 = vmatpush1.msra.mxu0 0.0
        %262 = vmatprep.subr.mxu0 0.0
        %263 = vmatpush1.msra.mxu0 0.0
        %264 = vmatprep.subr.mxu0 0.0
        %265 = vmatpush1.msra.mxu0 0.0
        %266 = vmatprep.subr.mxu0 0.0
        %267 = vmatpush1.msra.mxu0 0.0
        %268 = vmatprep.subr.mxu0 0.0
        %269 = vmatpush1.msra.mxu0 0.0
        %270 = vmatprep.subr.mxu0 0.0
        %271 = vmatpush1.msra.mxu0 0.0
        %272 = vmatprep.subr.mxu0 0.0
        %273 = vmatpush1.msra.mxu0 0.0
        %274 = vmatprep.mubr.f32.mxu0 0.0
        %275 = vmatmul.mubr.f32.gmra.mrb[0].mxu0 %v208
        %v276 = vpop.f32.mrb[0].mxu0
        %v277 = vadd.f32 0.0, %v276
        %v278 = vpop.f32.mrb[0].mxu0
        %v279 = vadd.f32 0.0, %v278
        %280 = vdwg.mxu0
        %281 = vmatprep.subr.mxu0 0.0
        %282 = vmatpush1.msra.mxu0 %v196
        %283 = vmatprep.subr.mxu0 0.0
        %284 = vmatpush1.msra.mxu0 %v199
        %285 = vmatprep.subr.mxu0 0.0
        %286 = vmatpush1.msra.mxu0 %v202
        %287 = vmatprep.subr.mxu0 0.0
        %288 = vmatpush1.msra.mxu0 %v205
        %289 = vmatprep.subr.mxu0 0.0
        %290 = vmatpush1.msra.mxu0 0.0
        %291 = vmatprep.subr.mxu0 0.0
        %292 = vmatpush1.msra.mxu0 0.0
        %293 = vmatprep.subr.mxu0 0.0
        %294 = vmatpush1.msra.mxu0 0.0
        %295 = vmatprep.subr.mxu0 0.0
        %296 = vmatpush1.msra.mxu0 0.0
        %297 = vmatprep.subr.mxu0 0.0
        %298 = vmatpush1.msra.mxu0 0.0
        %299 = vmatprep.subr.mxu0 0.0
        %300 = vmatpush1.msra.mxu0 0.0
        %301 = vmatprep.subr.mxu0 0.0
        %302 = vmatpush1.msra.mxu0 0.0
        %303 = vmatprep.subr.mxu0 0.0
        %304 = vmatpush1.msra.mxu0 0.0
        %305 = vmatprep.subr.mxu0 0.0
        %306 = vmatpush1.msra.mxu0 0.0
        %307 = vmatprep.subr.mxu0 0.0
        %308 = vmatpush1.msra.mxu0 0.0
        %309 = vmatprep.subr.mxu0 0.0
        %310 = vmatpush1.msra.mxu0 0.0
        %311 = vmatprep.subr.mxu0 0.0
        %312 = vmatpush1.msra.mxu0 0.0
        %313 = vmatprep.subr.mxu0 0.0
        %314 = vmatpush1.msra.mxu0 0.0
        %315 = vmatprep.subr.mxu0 0.0
        %316 = vmatpush1.msra.mxu0 0.0
        %317 = vmatprep.subr.mxu0 0.0
        %318 = vmatpush1.msra.mxu0 0.0
        %319 = vmatprep.subr.mxu0 0.0
        %320 = vmatpush1.msra.mxu0 0.0
        %321 = vmatprep.subr.mxu0 0.0
        %322 = vmatpush1.msra.mxu0 0.0
        %323 = vmatprep.subr.mxu0 0.0
        %324 = vmatpush1.msra.mxu0 0.0
        %325 = vmatprep.subr.mxu0 0.0
        %326 = vmatpush1.msra.mxu0 0.0
        %327 = vmatprep.subr.mxu0 0.0
        %328 = vmatpush1.msra.mxu0 0.0
        %329 = vmatprep.subr.mxu0 0.0
        %330 = vmatpush1.msra.mxu0 0.0
        %331 = vmatprep.subr.mxu0 0.0
        %332 = vmatpush1.msra.mxu0 0.0
        %333 = vmatprep.subr.mxu0 0.0
        %334 = vmatpush1.msra.mxu0 0.0
        %335 = vmatprep.subr.mxu0 0.0
        %336 = vmatpush1.msra.mxu0 0.0
        %337 = vmatprep.subr.mxu0 0.0
        %338 = vmatpush1.msra.mxu0 0.0
        %339 = vmatprep.subr.mxu0 0.0
        %340 = vmatpush1.msra.mxu0 0.0
        %341 = vmatprep.subr.mxu0 0.0
        %342 = vmatpush1.msra.mxu0 0.0
        %343 = vmatprep.subr.mxu0 0.0
        %344 = vmatpush1.msra.mxu0 0.0
        %345 = vmatprep.mubr.f32.mxu0 0.0
        %346 = vmatmul.mubr.f32.gmra.mrb[0].mxu0 %v208
        %v347 = vpop.f32.mrb[0].mxu0
        %v348 = vadd.f32 0.0, %v347
        %v349 = vpop.f32.mrb[0].mxu0
        %350 = vdwg.mxu0
        %v352 = vsel %vm206, %v277, 0
        %v355 = vsel %vm206, %v279, 0
        %357 = vmatprep.subr.mxu0 0.0
        %358 = vmatpush1.xpose.msra.mxu0 %v355
        %359 = vmatprep.subr.mxu0 0.0
        %360 = vmatpush1.xpose.msra.mxu0 0.0
        %361 = vmatprep.subr.mxu0 0.0
        %362 = vmatpush1.xpose.msra.mxu0 0.0
        %363 = vmatprep.subr.mxu0 0.0
        %364 = vmatpush1.xpose.msra.mxu0 0.0
        %365 = vmatprep.subr.mxu0 0.0
        %366 = vmatpush1.xpose.msra.mxu0 0.0
        %367 = vmatprep.subr.mxu0 0.0
        %368 = vmatpush1.xpose.msra.mxu0 0.0
        %369 = vmatprep.subr.mxu0 0.0
        %370 = vmatpush1.xpose.msra.mxu0 0.0
        %371 = vmatprep.subr.mxu0 0.0
        %372 = vmatpush1.xpose.msra.mxu0 0.0
        %373 = vmatprep.subr.mxu0 0.0
        %374 = vmatpush1.xpose.msra.mxu0 0.0
        %375 = vmatprep.subr.mxu0 0.0
        %376 = vmatpush1.xpose.msra.mxu0 0.0
        %377 = vmatprep.subr.mxu0 0.0
        %378 = vmatpush1.xpose.msra.mxu0 0.0
        %379 = vmatprep.subr.mxu0 0.0
        %380 = vmatpush1.xpose.msra.mxu0 0.0
        %381 = vmatprep.subr.mxu0 0.0
        %382 = vmatpush1.xpose.msra.mxu0 0.0
        %383 = vmatprep.subr.mxu0 0.0
        %384 = vmatpush1.xpose.msra.mxu0 0.0
        %385 = vmatprep.subr.mxu0 0.0
        %386 = vmatpush1.xpose.msra.mxu0 0.0
        %387 = vmatprep.subr.mxu0 0.0
        %388 = vmatpush1.xpose.msra.mxu0 0.0
        %389 = vmatprep.subr.mxu0 0.0
        %390 = vmatpush1.xpose.msra.mxu0 0.0
        %391 = vmatprep.subr.mxu0 0.0
        %392 = vmatpush1.xpose.msra.mxu0 0.0
        %393 = vmatprep.subr.mxu0 0.0
        %394 = vmatpush1.xpose.msra.mxu0 0.0
        %395 = vmatprep.subr.mxu0 0.0
        %396 = vmatpush1.xpose.msra.mxu0 0.0
        %397 = vmatprep.subr.mxu0 0.0
        %398 = vmatpush1.xpose.msra.mxu0 0.0
        %399 = vmatprep.subr.mxu0 0.0
        %400 = vmatpush1.xpose.msra.mxu0 0.0
        %401 = vmatprep.subr.mxu0 0.0
        %402 = vmatpush1.xpose.msra.mxu0 0.0
        %403 = vmatprep.subr.mxu0 0.0
        %404 = vmatpush1.xpose.msra.mxu0 0.0
        %405 = vmatprep.subr.mxu0 0.0
        %406 = vmatpush1.xpose.msra.mxu0 0.0
        %407 = vmatprep.subr.mxu0 0.0
        %408 = vmatpush1.xpose.msra.mxu0 0.0
        %409 = vmatprep.subr.mxu0 0.0
        %410 = vmatpush1.xpose.msra.mxu0 0.0
        %411 = vmatprep.subr.mxu0 0.0
        %412 = vmatpush1.xpose.msra.mxu0 0.0
        %413 = vmatprep.subr.mxu0 0.0
        %414 = vmatpush1.xpose.msra.mxu0 0.0
        %415 = vmatprep.subr.mxu0 0.0
        %416 = vmatpush1.xpose.msra.mxu0 0.0
        %417 = vmatprep.subr.mxu0 0.0
        %418 = vmatpush1.xpose.msra.mxu0 0.0
        %419 = vmatprep.subr.mxu0 0.0
        %420 = vmatpush1.xpose.msra.mxu0 0.0
        %421 = vmatprep.mubr.f32.mxu0 0.0
        %422 = vmatmul.mubr.f32.gmra.mrb[0].mxu0 %v352
        %v423 = vpop.f32.mrb[0].mxu0
        %v424 = vadd.f32 0.0, %v423
        %v425 = vpop.f32.mrb[0].mxu0
        %426 = vdwg.mxu0
        %vm427 = vcmask 64512
        %v428 = vsel %vm427, %v424, -inf
        %429 = vmax.xlane.f32.xlu0 %v428
        %v430 = vpop.xlane.xlu0 %429
        %v431 = vsub.f32 %v424, %v430
        %v432 = vmul.f32 %v431, 1.442695
        %v433 = vpow.pop %v432
        %v434 = vsel %vm427, %v433, 0.0
        %435 = vadd.xlane.f32.xlu0 %v434
        %v436 = vpop.xlane.xlu0 %435
        %v437 = vrcp.pop %v436
        %v439 = vsel %vm427, %v433, 0
        %441 = vmatprep.subr.mxu0 0.0
        %442 = vmatpush1.msra.mxu0 %v348
        %443 = vmatprep.subr.mxu0 0.0
        %444 = vmatpush1.msra.mxu0 0.0
        %445 = vmatprep.subr.mxu0 0.0
        %446 = vmatpush1.msra.mxu0 0.0
        %447 = vmatprep.subr.mxu0 0.0
        %448 = vmatpush1.msra.mxu0 0.0
        %449 = vmatprep.subr.mxu0 0.0
        %450 = vmatpush1.msra.mxu0 0.0
        %451 = vmatprep.subr.mxu0 0.0
        %452 = vmatpush1.msra.mxu0 0.0
        %453 = vmatprep.subr.mxu0 0.0
        %454 = vmatpush1.msra.mxu0 0.0
        %455 = vmatprep.subr.mxu0 0.0
        %456 = vmatpush1.msra.mxu0 0.0
        %457 = vmatprep.subr.mxu0 0.0
        %458 = vmatpush1.msra.mxu0 0.0
        %459 = vmatprep.subr.mxu0 0.0
        %460 = vmatpush1.msra.mxu0 0.0
        %461 = vmatprep.subr.mxu0 0.0
        %462 = vmatpush1.msra.mxu0 0.0
        %463 = vmatprep.subr.mxu0 0.0
        %464 = vmatpush1.msra.mxu0 0.0
        %465 = vmatprep.subr.mxu0 0.0
        %466 = vmatpush1.msra.mxu0 0.0
        %467 = vmatprep.subr.mxu0 0.0
        %468 = vmatpush1.msra.mxu0 0.0
        %469 = vmatprep.subr.mxu0 0.0
        %470 = vmatpush1.msra.mxu0 0.0
        %471 = vmatprep.subr.mxu0 0.0
        %472 = vmatpush1.msra.mxu0 0.0
        %473 = vmatprep.subr.mxu0 0.0
        %474 = vmatpush1.msra.mxu0 0.0
        %475 = vmatprep.subr.mxu0 0.0
        %476 = vmatpush1.msra.mxu0 0.0
        %477 = vmatprep.subr.mxu0 0.0
        %478 = vmatpush1.msra.mxu0 0.0
        %479 = vmatprep.subr.mxu0 0.0
        %480 = vmatpush1.msra.mxu0 0.0
        %481 = vmatprep.subr.mxu0 0.0
        %482 = vmatpush1.msra.mxu0 0.0
        %483 = vmatprep.subr.mxu0 0.0
        %484 = vmatpush1.msra.mxu0 0.0
        %485 = vmatprep.subr.mxu0 0.0
        %486 = vmatpush1.msra.mxu0 0.0
        %487 = vmatprep.subr.mxu0 0.0
        %488 = vmatpush1.msra.mxu0 0.0
        %489 = vmatprep.subr.mxu0 0.0
        %490 = vmatpush1.msra.mxu0 0.0
        %491 = vmatprep.subr.mxu0 0.0
        %492 = vmatpush1.msra.mxu0 0.0
        %493 = vmatprep.subr.mxu0 0.0
        %494 = vmatpush1.msra.mxu0 0.0
        %495 = vmatprep.subr.mxu0 0.0
        %496 = vmatpush1.msra.mxu0 0.0
        %497 = vmatprep.subr.mxu0 0.0
        %498 = vmatpush1.msra.mxu0 0.0
        %499 = vmatprep.subr.mxu0 0.0
        %500 = vmatpush1.msra.mxu0 0.0
        %501 = vmatprep.subr.mxu0 0.0
        %502 = vmatpush1.msra.mxu0 0.0
        %503 = vmatprep.subr.mxu0 0.0
        %504 = vmatpush1.msra.mxu0 0.0
        %505 = vmatprep.mubr.f32.mxu0 0.0
        %506 = vmatmul.mubr.f32.gmra.mrb[0].mxu0 %v439
        %v507 = vpop.f32.mrb[0].mxu0
        %v508 = vadd.f32 0.0, %v507
        %v509 = vpop.f32.mrb[0].mxu0
        %510 = vdwg.mxu0
        %v511 = vmul.f32 %v508, %v437
        %512 = vrot.lane.b32.xlu0 %v277, 96
        %v513 = vpop.permute.xlu0 %512
        %514 = vrot.lane.b32.xlu0 %v279, 96
        %v515 = vpop.permute.xlu0 %514
        %v516 = vsel %vm206, %v513, 0
        %v518 = vsel %vm206, %v515, 0
        %520 = vmatprep.subr.mxu0 0.0
        %521 = vmatpush1.xpose.msra.mxu0 %v518
        %522 = vmatprep.subr.mxu0 0.0
        %523 = vmatpush1.xpose.msra.mxu0 0.0
        %524 = vmatprep.subr.mxu0 0.0
        %525 = vmatpush1.xpose.msra.mxu0 0.0
        %526 = vmatprep.subr.mxu0 0.0
        %527 = vmatpush1.xpose.msra.mxu0 0.0
        %528 = vmatprep.subr.mxu0 0.0
        %529 = vmatpush1.xpose.msra.mxu0 0.0
        %530 = vmatprep.subr.mxu0 0.0
        %531 = vmatpush1.xpose.msra.mxu0 0.0
        %532 = vmatprep.subr.mxu0 0.0
        %533 = vmatpush1.xpose.msra.mxu0 0.0
        %534 = vmatprep.subr.mxu0 0.0
        %535 = vmatpush1.xpose.msra.mxu0 0.0
        %536 = vmatprep.subr.mxu0 0.0
        %537 = vmatpush1.xpose.msra.mxu0 0.0
        %538 = vmatprep.subr.mxu0 0.0
        %539 = vmatpush1.xpose.msra.mxu0 0.0
        %540 = vmatprep.subr.mxu0 0.0
        %541 = vmatpush1.xpose.msra.mxu0 0.0
        %542 = vmatprep.subr.mxu0 0.0
        %543 = vmatpush1.xpose.msra.mxu0 0.0
        %544 = vmatprep.subr.mxu0 0.0
        %545 = vmatpush1.xpose.msra.mxu0 0.0
        %546 = vmatprep.subr.mxu0 0.0
        %547 = vmatpush1.xpose.msra.mxu0 0.0
        %548 = vmatprep.subr.mxu0 0.0
        %549 = vmatpush1.xpose.msra.mxu0 0.0
        %550 = vmatprep.subr.mxu0 0.0
        %551 = vmatpush1.xpose.msra.mxu0 0.0
        %552 = vmatprep.subr.mxu0 0.0
        %553 = vmatpush1.xpose.msra.mxu0 0.0
        %554 = vmatprep.subr.mxu0 0.0
        %555 = vmatpush1.xpose.msra.mxu0 0.0
        %556 = vmatprep.subr.mxu0 0.0
        %557 = vmatpush1.xpose.msra.mxu0 0.0
        %558 = vmatprep.subr.mxu0 0.0
        %559 = vmatpush1.xpose.msra.mxu0 0.0
        %560 = vmatprep.subr.mxu0 0.0
        %561 = vmatpush1.xpose.msra.mxu0 0.0
        %562 = vmatprep.subr.mxu0 0.0
        %563 = vmatpush1.xpose.msra.mxu0 0.0
        %564 = vmatprep.subr.mxu0 0.0
        %565 = vmatpush1.xpose.msra.mxu0 0.0
        %566 = vmatprep.subr.mxu0 0.0
        %567 = vmatpush1.xpose.msra.mxu0 0.0
        %568 = vmatprep.subr.mxu0 0.0
        %569 = vmatpush1.xpose.msra.mxu0 0.0
        %570 = vmatprep.subr.mxu0 0.0
        %571 = vmatpush1.xpose.msra.mxu0 0.0
        %572 = vmatprep.subr.mxu0 0.0
        %573 = vmatpush1.xpose.msra.mxu0 0.0
        %574 = vmatprep.subr.mxu0 0.0
        %575 = vmatpush1.xpose.msra.mxu0 0.0
        %576 = vmatprep.subr.mxu0 0.0
        %577 = vmatpush1.xpose.msra.mxu0 0.0
        %578 = vmatprep.subr.mxu0 0.0
        %579 = vmatpush1.xpose.msra.mxu0 0.0
        %580 = vmatprep.subr.mxu0 0.0
        %581 = vmatpush1.xpose.msra.mxu0 0.0
        %582 = vmatprep.subr.mxu0 0.0
        %583 = vmatpush1.xpose.msra.mxu0 0.0
        %584 = vmatprep.mubr.f32.mxu0 0.0
        %585 = vmatmul.mubr.f32.gmra.mrb[0].mxu0 %v516
        %v586 = vpop.f32.mrb[0].mxu0
        %v587 = vadd.f32 0.0, %v586
        %v588 = vpop.f32.mrb[0].mxu0
        %589 = vdwg.mxu0
        %v590 = vsel %vm427, %v587, -inf
        %591 = vmax.xlane.f32.xlu0 %v590
        %v592 = vpop.xlane.xlu0 %591
        %v593 = vsub.f32 %v587, %v592
        %v594 = vmul.f32 %v593, 1.442695
        %v595 = vpow.pop %v594
        %v596 = vsel %vm427, %v595, 0.0
        %597 = vadd.xlane.f32.xlu0 %v596
        %v598 = vpop.xlane.xlu0 %597
        %v599 = vrcp.pop %v598
        %601 = vrot.lane.b32.xlu0 %v348, 96
        %v602 = vpop.permute.xlu0 %601
        %v605 = vsel %vm427, %v595, 0
        %607 = vmatprep.subr.mxu0 0.0
        %608 = vmatpush1.msra.mxu0 %v602
        %609 = vmatprep.subr.mxu0 0.0
        %610 = vmatpush1.msra.mxu0 0.0
        %611 = vmatprep.subr.mxu0 0.0
        %612 = vmatpush1.msra.mxu0 0.0
        %613 = vmatprep.subr.mxu0 0.0
        %614 = vmatpush1.msra.mxu0 0.0
        %615 = vmatprep.subr.mxu0 0.0
        %616 = vmatpush1.msra.mxu0 0.0
        %617 = vmatprep.subr.mxu0 0.0
        %618 = vmatpush1.msra.mxu0 0.0
        %619 = vmatprep.subr.mxu0 0.0
        %620 = vmatpush1.msra.mxu0 0.0
        %621 = vmatprep.subr.mxu0 0.0
        %622 = vmatpush1.msra.mxu0 0.0
        %623 = vmatprep.subr.mxu0 0.0
        %624 = vmatpush1.msra.mxu0 0.0
        %625 = vmatprep.subr.mxu0 0.0
        %626 = vmatpush1.msra.mxu0 0.0
        %627 = vmatprep.subr.mxu0 0.0
        %628 = vmatpush1.msra.mxu0 0.0
        %629 = vmatprep.subr.mxu0 0.0
        %630 = vmatpush1.msra.mxu0 0.0
        %631 = vmatprep.subr.mxu0 0.0
        %632 = vmatpush1.msra.mxu0 0.0
        %633 = vmatprep.subr.mxu0 0.0
        %634 = vmatpush1.msra.mxu0 0.0
        %635 = vmatprep.subr.mxu0 0.0
        %636 = vmatpush1.msra.mxu0 0.0
        %637 = vmatprep.subr.mxu0 0.0
        %638 = vmatpush1.msra.mxu0 0.0
        %639 = vmatprep.subr.mxu0 0.0
        %640 = vmatpush1.msra.mxu0 0.0
        %641 = vmatprep.subr.mxu0 0.0
        %642 = vmatpush1.msra.mxu0 0.0
        %643 = vmatprep.subr.mxu0 0.0
        %644 = vmatpush1.msra.mxu0 0.0
        %645 = vmatprep.subr.mxu0 0.0
        %646 = vmatpush1.msra.mxu0 0.0
        %647 = vmatprep.subr.mxu0 0.0
        %648 = vmatpush1.msra.mxu0 0.0
        %649 = vmatprep.subr.mxu0 0.0
        %650 = vmatpush1.msra.mxu0 0.0
        %651 = vmatprep.subr.mxu0 0.0
        %652 = vmatpush1.msra.mxu0 0.0
        %653 = vmatprep.subr.mxu0 0.0
        %654 = vmatpush1.msra.mxu0 0.0
        %655 = vmatprep.subr.mxu0 0.0
        %656 = vmatpush1.msra.mxu0 0.0
        %657 = vmatprep.subr.mxu0 0.0
        %658 = vmatpush1.msra.mxu0 0.0
        %659 = vmatprep.subr.mxu0 0.0
        %660 = vmatpush1.msra.mxu0 0.0
        %661 = vmatprep.subr.mxu0 0.0
        %662 = vmatpush1.msra.mxu0 0.0
        %663 = vmatprep.subr.mxu0 0.0
        %664 = vmatpush1.msra.mxu0 0.0
        %665 = vmatprep.subr.mxu0 0.0
        %666 = vmatpush1.msra.mxu0 0.0
        %667 = vmatprep.subr.mxu0 0.0
        %668 = vmatpush1.msra.mxu0 0.0
        %669 = vmatprep.subr.mxu0 0.0
        %670 = vmatpush1.msra.mxu0 0.0
        %671 = vmatprep.mubr.f32.mxu0 0.0
        %672 = vmatmul.mubr.f32.gmra.mrb[0].mxu0 %v605
        %v673 = vpop.f32.mrb[0].mxu0
        %v674 = vadd.f32 0.0, %v673
        %v675 = vpop.f32.mrb[0].mxu0
        %676 = vdwg.mxu0
        %v677 = vmul.f32 %v674, %v599
        %678 = vrot.lane.b32.xlu0 %v277, 64
        %v679 = vpop.permute.xlu0 %678
        %680 = vrot.lane.b32.xlu0 %v279, 64
        %v681 = vpop.permute.xlu0 %680
        %v682 = vsel %vm206, %v679, 0
        %v684 = vsel %vm206, %v681, 0
        %686 = vmatprep.subr.mxu0 0.0
        %687 = vmatpush1.xpose.msra.mxu0 %v684
        %688 = vmatprep.subr.mxu0 0.0
        %689 = vmatpush1.xpose.msra.mxu0 0.0
        %690 = vmatprep.subr.mxu0 0.0
        %691 = vmatpush1.xpose.msra.mxu0 0.0
        %692 = vmatprep.subr.mxu0 0.0
        %693 = vmatpush1.xpose.msra.mxu0 0.0
        %694 = vmatprep.subr.mxu0 0.0
        %695 = vmatpush1.xpose.msra.mxu0 0.0
        %696 = vmatprep.subr.mxu0 0.0
        %697 = vmatpush1.xpose.msra.mxu0 0.0
        %698 = vmatprep.subr.mxu0 0.0
        %699 = vmatpush1.xpose.msra.mxu0 0.0
        %700 = vmatprep.subr.mxu0 0.0
        %701 = vmatpush1.xpose.msra.mxu0 0.0
        %702 = vmatprep.subr.mxu0 0.0
        %703 = vmatpush1.xpose.msra.mxu0 0.0
        %704 = vmatprep.subr.mxu0 0.0
        %705 = vmatpush1.xpose.msra.mxu0 0.0
        %706 = vmatprep.subr.mxu0 0.0
        %707 = vmatpush1.xpose.msra.mxu0 0.0
        %708 = vmatprep.subr.mxu0 0.0
        %709 = vmatpush1.xpose.msra.mxu0 0.0
        %710 = vmatprep.subr.mxu0 0.0
        %711 = vmatpush1.xpose.msra.mxu0 0.0
        %712 = vmatprep.subr.mxu0 0.0
        %713 = vmatpush1.xpose.msra.mxu0 0.0
        %714 = vmatprep.subr.mxu0 0.0
        %715 = vmatpush1.xpose.msra.mxu0 0.0
        %716 = vmatprep.subr.mxu0 0.0
        %717 = vmatpush1.xpose.msra.mxu0 0.0
        %718 = vmatprep.subr.mxu0 0.0
        %719 = vmatpush1.xpose.msra.mxu0 0.0
        %720 = vmatprep.subr.mxu0 0.0
        %721 = vmatpush1.xpose.msra.mxu0 0.0
        %722 = vmatprep.subr.mxu0 0.0
        %723 = vmatpush1.xpose.msra.mxu0 0.0
        %724 = vmatprep.subr.mxu0 0.0
        %725 = vmatpush1.xpose.msra.mxu0 0.0
        %726 = vmatprep.subr.mxu0 0.0
        %727 = vmatpush1.xpose.msra.mxu0 0.0
        %728 = vmatprep.subr.mxu0 0.0
        %729 = vmatpush1.xpose.msra.mxu0 0.0
        %730 = vmatprep.subr.mxu0 0.0
        %731 = vmatpush1.xpose.msra.mxu0 0.0
        %732 = vmatprep.subr.mxu0 0.0
        %733 = vmatpush1.xpose.msra.mxu0 0.0
        %734 = vmatprep.subr.mxu0 0.0
        %735 = vmatpush1.xpose.msra.mxu0 0.0
        %736 = vmatprep.subr.mxu0 0.0
        %737 = vmatpush1.xpose.msra.mxu0 0.0
        %738 = vmatprep.subr.mxu0 0.0
        %739 = vmatpush1.xpose.msra.mxu0 0.0
        %740 = vmatprep.subr.mxu0 0.0
        %741 = vmatpush1.xpose.msra.mxu0 0.0
        %742 = vmatprep.subr.mxu0 0.0
        %743 = vmatpush1.xpose.msra.mxu0 0.0
        %744 = vmatprep.subr.mxu0 0.0
        %745 = vmatpush1.xpose.msra.mxu0 0.0
        %746 = vmatprep.subr.mxu0 0.0
        %747 = vmatpush1.xpose.msra.mxu0 0.0
        %748 = vmatprep.subr.mxu0 0.0
        %749 = vmatpush1.xpose.msra.mxu0 0.0
        %750 = vmatprep.mubr.f32.mxu0 0.0
        %751 = vmatmul.mubr.f32.gmra.mrb[0].mxu0 %v682
        %v752 = vpop.f32.mrb[0].mxu0
        %v753 = vadd.f32 0.0, %v752
        %v754 = vpop.f32.mrb[0].mxu0
        %755 = vdwg.mxu0
        %v756 = vsel %vm427, %v753, -inf
        %757 = vmax.xlane.f32.xlu0 %v756
        %v758 = vpop.xlane.xlu0 %757
        %v759 = vsub.f32 %v753, %v758
        %v760 = vmul.f32 %v759, 1.442695
        %v761 = vpow.pop %v760
        %v762 = vsel %vm427, %v761, 0.0
        %763 = vadd.xlane.f32.xlu0 %v762
        %v764 = vpop.xlane.xlu0 %763
        %v765 = vrcp.pop %v764
        %766 = vrot.lane.b32.xlu0 %v348, 64
        %v767 = vpop.permute.xlu0 %766
        %v770 = vsel %vm427, %v761, 0
        %772 = vmatprep.subr.mxu0 0.0
        %773 = vmatpush1.msra.mxu0 %v767
        %774 = vmatprep.subr.mxu0 0.0
        %775 = vmatpush1.msra.mxu0 0.0
        %776 = vmatprep.subr.mxu0 0.0
        %777 = vmatpush1.msra.mxu0 0.0
        %778 = vmatprep.subr.mxu0 0.0
        %779 = vmatpush1.msra.mxu0 0.0
        %780 = vmatprep.subr.mxu0 0.0
        %781 = vmatpush1.msra.mxu0 0.0
        %782 = vmatprep.subr.mxu0 0.0
        %783 = vmatpush1.msra.mxu0 0.0
        %784 = vmatprep.subr.mxu0 0.0
        %785 = vmatpush1.msra.mxu0 0.0
        %786 = vmatprep.subr.mxu0 0.0
        %787 = vmatpush1.msra.mxu0 0.0
        %788 = vmatprep.subr.mxu0 0.0
        %789 = vmatpush1.msra.mxu0 0.0
        %790 = vmatprep.subr.mxu0 0.0
        %791 = vmatpush1.msra.mxu0 0.0
        %792 = vmatprep.subr.mxu0 0.0
        %793 = vmatpush1.msra.mxu0 0.0
        %794 = vmatprep.subr.mxu0 0.0
        %795 = vmatpush1.msra.mxu0 0.0
        %796 = vmatprep.subr.mxu0 0.0
        %797 = vmatpush1.msra.mxu0 0.0
        %798 = vmatprep.subr.mxu0 0.0
        %799 = vmatpush1.msra.mxu0 0.0
        %800 = vmatprep.subr.mxu0 0.0
        %801 = vmatpush1.msra.mxu0 0.0
        %802 = vmatprep.subr.mxu0 0.0
        %803 = vmatpush1.msra.mxu0 0.0
        %804 = vmatprep.subr.mxu0 0.0
        %805 = vmatpush1.msra.mxu0 0.0
        %806 = vmatprep.subr.mxu0 0.0
        %807 = vmatpush1.msra.mxu0 0.0
        %808 = vmatprep.subr.mxu0 0.0
        %809 = vmatpush1.msra.mxu0 0.0
        %810 = vmatprep.subr.mxu0 0.0
        %811 = vmatpush1.msra.mxu0 0.0
        %812 = vmatprep.subr.mxu0 0.0
        %813 = vmatpush1.msra.mxu0 0.0
        %814 = vmatprep.subr.mxu0 0.0
        %815 = vmatpush1.msra.mxu0 0.0
        %816 = vmatprep.subr.mxu0 0.0
        %817 = vmatpush1.msra.mxu0 0.0
        %818 = vmatprep.subr.mxu0 0.0
        %819 = vmatpush1.msra.mxu0 0.0
        %820 = vmatprep.subr.mxu0 0.0
        %821 = vmatpush1.msra.mxu0 0.0
        %822 = vmatprep.subr.mxu0 0.0
        %823 = vmatpush1.msra.mxu0 0.0
        %824 = vmatprep.subr.mxu0 0.0
        %825 = vmatpush1.msra.mxu0 0.0
        %826 = vmatprep.subr.mxu0 0.0
        %827 = vmatpush1.msra.mxu0 0.0
        %828 = vmatprep.subr.mxu0 0.0
        %829 = vmatpush1.msra.mxu0 0.0
        %830 = vmatprep.subr.mxu0 0.0
        %831 = vmatpush1.msra.mxu0 0.0
        %832 = vmatprep.subr.mxu0 0.0
        %833 = vmatpush1.msra.mxu0 0.0
        %834 = vmatprep.subr.mxu0 0.0
        %835 = vmatpush1.msra.mxu0 0.0
        %836 = vmatprep.mubr.f32.mxu0 0.0
        %837 = vmatmul.mubr.f32.gmra.mrb[0].mxu0 %v770
        %v838 = vpop.f32.mrb[0].mxu0
        %v839 = vadd.f32 0.0, %v838
        %v840 = vpop.f32.mrb[0].mxu0
        %841 = vdwg.mxu0
        %v842 = vmul.f32 %v839, %v765
        %843 = vrot.lane.b32.xlu0 %v277, 32
        %v844 = vpop.permute.xlu0 %843
        %845 = vrot.lane.b32.xlu0 %v279, 32
        %v846 = vpop.permute.xlu0 %845
        %v847 = vsel %vm206, %v844, 0
        %v849 = vsel %vm206, %v846, 0
        %851 = vmatprep.subr.mxu0 0.0
        %852 = vmatpush1.xpose.msra.mxu0 %v849
        %853 = vmatprep.subr.mxu0 0.0
        %854 = vmatpush1.xpose.msra.mxu0 0.0
        %855 = vmatprep.subr.mxu0 0.0
        %856 = vmatpush1.xpose.msra.mxu0 0.0
        %857 = vmatprep.subr.mxu0 0.0
        %858 = vmatpush1.xpose.msra.mxu0 0.0
        %859 = vmatprep.subr.mxu0 0.0
        %860 = vmatpush1.xpose.msra.mxu0 0.0
        %861 = vmatprep.subr.mxu0 0.0
        %862 = vmatpush1.xpose.msra.mxu0 0.0
        %863 = vmatprep.subr.mxu0 0.0
        %864 = vmatpush1.xpose.msra.mxu0 0.0
        %865 = vmatprep.subr.mxu0 0.0
        %866 = vmatpush1.xpose.msra.mxu0 0.0
        %867 = vmatprep.subr.mxu0 0.0
        %868 = vmatpush1.xpose.msra.mxu0 0.0
        %869 = vmatprep.subr.mxu0 0.0
        %870 = vmatpush1.xpose.msra.mxu0 0.0
        %871 = vmatprep.subr.mxu0 0.0
        %872 = vmatpush1.xpose.msra.mxu0 0.0
        %873 = vmatprep.subr.mxu0 0.0
        %874 = vmatpush1.xpose.msra.mxu0 0.0
        %875 = vmatprep.subr.mxu0 0.0
        %876 = vmatpush1.xpose.msra.mxu0 0.0
        %877 = vmatprep.subr.mxu0 0.0
        %878 = vmatpush1.xpose.msra.mxu0 0.0
        %879 = vmatprep.subr.mxu0 0.0
        %880 = vmatpush1.xpose.msra.mxu0 0.0
        %881 = vmatprep.subr.mxu0 0.0
        %882 = vmatpush1.xpose.msra.mxu0 0.0
        %883 = vmatprep.subr.mxu0 0.0
        %884 = vmatpush1.xpose.msra.mxu0 0.0
        %885 = vmatprep.subr.mxu0 0.0
        %886 = vmatpush1.xpose.msra.mxu0 0.0
        %887 = vmatprep.subr.mxu0 0.0
        %888 = vmatpush1.xpose.msra.mxu0 0.0
        %889 = vmatprep.subr.mxu0 0.0
        %890 = vmatpush1.xpose.msra.mxu0 0.0
        %891 = vmatprep.subr.mxu0 0.0
        %892 = vmatpush1.xpose.msra.mxu0 0.0
        %893 = vmatprep.subr.mxu0 0.0
        %894 = vmatpush1.xpose.msra.mxu0 0.0
        %895 = vmatprep.subr.mxu0 0.0
        %896 = vmatpush1.xpose.msra.mxu0 0.0
        %897 = vmatprep.subr.mxu0 0.0
        %898 = vmatpush1.xpose.msra.mxu0 0.0
        %899 = vmatprep.subr.mxu0 0.0
        %900 = vmatpush1.xpose.msra.mxu0 0.0
        %901 = vmatprep.subr.mxu0 0.0
        %902 = vmatpush1.xpose.msra.mxu0 0.0
        %903 = vmatprep.subr.mxu0 0.0
        %904 = vmatpush1.xpose.msra.mxu0 0.0
        %905 = vmatprep.subr.mxu0 0.0
        %906 = vmatpush1.xpose.msra.mxu0 0.0
        %907 = vmatprep.subr.mxu0 0.0
        %908 = vmatpush1.xpose.msra.mxu0 0.0
        %909 = vmatprep.subr.mxu0 0.0
        %910 = vmatpush1.xpose.msra.mxu0 0.0
        %911 = vmatprep.subr.mxu0 0.0
        %912 = vmatpush1.xpose.msra.mxu0 0.0
        %913 = vmatprep.subr.mxu0 0.0
        %914 = vmatpush1.xpose.msra.mxu0 0.0
        %915 = vmatprep.mubr.f32.mxu0 0.0
        %916 = vmatmul.mubr.f32.gmra.mrb[0].mxu0 %v847
        %v917 = vpop.f32.mrb[0].mxu0
        %v918 = vadd.f32 0.0, %v917
        %v919 = vpop.f32.mrb[0].mxu0
        %920 = vdwg.mxu0
        %v921 = vsel %vm427, %v918, -inf
        %922 = vmax.xlane.f32.xlu0 %v921
        %v923 = vpop.xlane.xlu0 %922
        %v924 = vsub.f32 %v918, %v923
        %v925 = vmul.f32 %v924, 1.442695
        %v926 = vpow.pop %v925
        %v927 = vsel %vm427, %v926, 0.0
        %928 = vadd.xlane.f32.xlu0 %v927
        %v929 = vpop.xlane.xlu0 %928
        %v930 = vrcp.pop %v929
        %931 = vrot.lane.b32.xlu0 %v348, 32
        %v932 = vpop.permute.xlu0 %931
        %v935 = vsel %vm427, %v926, 0
        %937 = vmatprep.subr.mxu0 0.0
        %938 = vmatpush1.msra.mxu0 %v932
        %939 = vmatprep.subr.mxu0 0.0
        %940 = vmatpush1.msra.mxu0 0.0
        %941 = vmatprep.subr.mxu0 0.0
        %942 = vmatpush1.msra.mxu0 0.0
        %943 = vmatprep.subr.mxu0 0.0
        %944 = vmatpush1.msra.mxu0 0.0
        %945 = vmatprep.subr.mxu0 0.0
        %946 = vmatpush1.msra.mxu0 0.0
        %947 = vmatprep.subr.mxu0 0.0
        %948 = vmatpush1.msra.mxu0 0.0
        %949 = vmatprep.subr.mxu0 0.0
        %950 = vmatpush1.msra.mxu0 0.0
        %951 = vmatprep.subr.mxu0 0.0
        %952 = vmatpush1.msra.mxu0 0.0
        %953 = vmatprep.subr.mxu0 0.0
        %954 = vmatpush1.msra.mxu0 0.0
        %955 = vmatprep.subr.mxu0 0.0
        %956 = vmatpush1.msra.mxu0 0.0
        %957 = vmatprep.subr.mxu0 0.0
        %958 = vmatpush1.msra.mxu0 0.0
        %959 = vmatprep.subr.mxu0 0.0
        %960 = vmatpush1.msra.mxu0 0.0
        %961 = vmatprep.subr.mxu0 0.0
        %962 = vmatpush1.msra.mxu0 0.0
        %963 = vmatprep.subr.mxu0 0.0
        %964 = vmatpush1.msra.mxu0 0.0
        %965 = vmatprep.subr.mxu0 0.0
        %966 = vmatpush1.msra.mxu0 0.0
        %967 = vmatprep.subr.mxu0 0.0
        %968 = vmatpush1.msra.mxu0 0.0
        %969 = vmatprep.subr.mxu0 0.0
        %970 = vmatpush1.msra.mxu0 0.0
        %971 = vmatprep.subr.mxu0 0.0
        %972 = vmatpush1.msra.mxu0 0.0
        %973 = vmatprep.subr.mxu0 0.0
        %974 = vmatpush1.msra.mxu0 0.0
        %975 = vmatprep.subr.mxu0 0.0
        %976 = vmatpush1.msra.mxu0 0.0
        %977 = vmatprep.subr.mxu0 0.0
        %978 = vmatpush1.msra.mxu0 0.0
        %979 = vmatprep.subr.mxu0 0.0
        %980 = vmatpush1.msra.mxu0 0.0
        %981 = vmatprep.subr.mxu0 0.0
        %982 = vmatpush1.msra.mxu0 0.0
        %983 = vmatprep.subr.mxu0 0.0
        %984 = vmatpush1.msra.mxu0 0.0
        %985 = vmatprep.subr.mxu0 0.0
        %986 = vmatpush1.msra.mxu0 0.0
        %987 = vmatprep.subr.mxu0 0.0
        %988 = vmatpush1.msra.mxu0 0.0
        %989 = vmatprep.subr.mxu0 0.0
        %990 = vmatpush1.msra.mxu0 0.0
        %991 = vmatprep.subr.mxu0 0.0
        %992 = vmatpush1.msra.mxu0 0.0
        %993 = vmatprep.subr.mxu0 0.0
        %994 = vmatpush1.msra.mxu0 0.0
        %995 = vmatprep.subr.mxu0 0.0
        %996 = vmatpush1.msra.mxu0 0.0
        %997 = vmatprep.subr.mxu0 0.0
        %998 = vmatpush1.msra.mxu0 0.0
        %999 = vmatprep.subr.mxu0 0.0
        %1000 = vmatpush1.msra.mxu0 0.0
        %1001 = vmatprep.mubr.f32.mxu0 0.0
        %1002 = vmatmul.mubr.f32.gmra.mrb[0].mxu0 %v935
        %v1003 = vpop.f32.mrb[0].mxu0
        %v1004 = vadd.f32 0.0, %v1003
        %v1005 = vpop.f32.mrb[0].mxu0
        %1006 = vdwg.mxu0
        %v1007 = vmul.f32 %v1004, %v930
        %1009 = vrot.lane.b32.xlu0 %v677, 32
        %v1010 = vpop.permute.xlu0 %1009
        %1013 = vrot.lane.b32.xlu0 %v842, 64
        %v1014 = vpop.permute.xlu0 %1013
        %1017 = vrot.lane.b32.xlu0 %v1007, 96
        %v1018 = vpop.permute.xlu0 %1017
        %v1020 = vsel %vm206, %v511, %v1010
        %vm1021 = vcmask 523264
        %v1022 = vsel %vm1021, %v1020, %v1014
        %vm1023 = vcmask 785408
        %v1024 = vsel %vm1023, %v1022, %v1018
        %v1025 = vld [vmem:[%s2] sm:$0xff]
        %v1026 = vld [vmem:[%s2 + $0x8] sm:$0xff]
        %v1027 = vld [vmem:[%s2 + $0x10] sm:$0xff]
        %v1028 = vld [vmem:[%s2 + $0x18] sm:$0xff]
        %v1029 = vld [vmem:[%s2 + $0x20] sm:$0xff]
        %v1030 = vld [vmem:[%s2 + $0x28] sm:$0xff]
        %v1031 = vld [vmem:[%s2 + $0x30] sm:$0xff]
        %v1032 = vld [vmem:[%s2 + $0x38] sm:$0xff]
        %v1033 = vld [vmem:[%s2 + $0x40] sm:$0xff]
        %v1034 = vld [vmem:[%s2 + $0x48] sm:$0xff]
        %v1035 = vld [vmem:[%s2 + $0x50] sm:$0xff]
        %v1036 = vld [vmem:[%s2 + $0x58] sm:$0xff]
        %v1037 = vld [vmem:[%s2 + $0x60] sm:$0xff]
        %v1038 = vld [vmem:[%s2 + $0x68] sm:$0xff]
        %v1039 = vld [vmem:[%s2 + $0x70] sm:$0xff]
        %v1040 = vld [vmem:[%s2 + $0x78] sm:$0xff]
        %v1041 = vld [vmem:[%s3] sm:$0x1]
        %v1043 = vlaneseq
        %v1044 = vshrl.u32 %v1043, 7
        %v1045 = vsub.s32 0, %v1044
        %v1046 = vrot.slane %v1041, %v1045
        %1048 = vmatprep.subr.mxu0 0.0
        %1049 = vmatpush1.msra.mxu0 %v1025
        %1050 = vmatprep.subr.mxu0 0.0
        %1051 = vmatpush1.msra.mxu0 %v1026
        %1052 = vmatprep.subr.mxu0 0.0
        %1053 = vmatpush1.msra.mxu0 %v1027
        %1054 = vmatprep.subr.mxu0 0.0
        %1055 = vmatpush1.msra.mxu0 %v1028
        %1056 = vmatprep.subr.mxu0 0.0
        %1057 = vmatpush1.msra.mxu0 %v1029
        %1058 = vmatprep.subr.mxu0 0.0
        %1059 = vmatpush1.msra.mxu0 %v1030
        %1060 = vmatprep.subr.mxu0 0.0
        %1061 = vmatpush1.msra.mxu0 %v1031
        %1062 = vmatprep.subr.mxu0 0.0
        %1063 = vmatpush1.msra.mxu0 %v1032
        %1064 = vmatprep.subr.mxu0 0.0
        %1065 = vmatpush1.msra.mxu0 %v1033
        %1066 = vmatprep.subr.mxu0 0.0
        %1067 = vmatpush1.msra.mxu0 %v1034
        %1068 = vmatprep.subr.mxu0 0.0
        %1069 = vmatpush1.msra.mxu0 %v1035
        %1070 = vmatprep.subr.mxu0 0.0
        %1071 = vmatpush1.msra.mxu0 %v1036
        %1072 = vmatprep.subr.mxu0 0.0
        %1073 = vmatpush1.msra.mxu0 %v1037
        %1074 = vmatprep.subr.mxu0 0.0
        %1075 = vmatpush1.msra.mxu0 %v1038
        %1076 = vmatprep.subr.mxu0 0.0
        %1077 = vmatpush1.msra.mxu0 %v1039
        %1078 = vmatprep.subr.mxu0 0.0
        %1079 = vmatpush1.msra.mxu0 %v1040
        %1080 = vmatprep.subr.mxu0 0.0
        %1081 = vmatpush1.msra.mxu0 0.0
        %1082 = vmatprep.subr.mxu0 0.0
        %1083 = vmatpush1.msra.mxu0 0.0
        %1084 = vmatprep.subr.mxu0 0.0
        %1085 = vmatpush1.msra.mxu0 0.0
        %1086 = vmatprep.subr.mxu0 0.0
        %1087 = vmatpush1.msra.mxu0 0.0
        %1088 = vmatprep.subr.mxu0 0.0
        %1089 = vmatpush1.msra.mxu0 0.0
        %1090 = vmatprep.subr.mxu0 0.0
        %1091 = vmatpush1.msra.mxu0 0.0
        %1092 = vmatprep.subr.mxu0 0.0
        %1093 = vmatpush1.msra.mxu0 0.0
        %1094 = vmatprep.subr.mxu0 0.0
        %1095 = vmatpush1.msra.mxu0 0.0
        %1096 = vmatprep.subr.mxu0 0.0
        %1097 = vmatpush1.msra.mxu0 0.0
        %1098 = vmatprep.subr.mxu0 0.0
        %1099 = vmatpush1.msra.mxu0 0.0
        %1100 = vmatprep.subr.mxu0 0.0
        %1101 = vmatpush1.msra.mxu0 0.0
        %1102 = vmatprep.subr.mxu0 0.0
        %1103 = vmatpush1.msra.mxu0 0.0
        %1104 = vmatprep.subr.mxu0 0.0
        %1105 = vmatpush1.msra.mxu0 0.0
        %1106 = vmatprep.subr.mxu0 0.0
        %1107 = vmatpush1.msra.mxu0 0.0
        %1108 = vmatprep.subr.mxu0 0.0
        %1109 = vmatpush1.msra.mxu0 0.0
        %1110 = vmatprep.subr.mxu0 0.0
        %1111 = vmatpush1.msra.mxu0 0.0
        %1112 = vmatprep.mubr.f32.mxu0 0.0
        %1113 = vmatmul.mubr.f32.gmra.mrb[0].mxu0 %v1024
        %v1114 = vpop.f32.mrb[0].mxu0
        %v1115 = vadd.f32 %v1046, %v1114
        %v1116 = vpop.f32.mrb[0].mxu0
        %1117 = vdwg.mxu0
        %1118 = vst.msk [vmem:[%s188] sm:$0xff] %vm206, %v1115
        %s1119 = sand.u32 %s115, 1
        %s1120 = scalar_lea.sflag [#allocation3], %s1119
        %s1121 = sand.u32 %s115, 1
        %s1122 = smul.addr %s1121, 8
        %s1123 = scalar_lea.vmem [#allocation2], %s1122
        // Predicated region
        $region37: #{tpu_custom_call.1} parent=35 // pred_check
          %p1124 = pneg %p125
        $region38: #{tpu_custom_call.1} parent=35 // pred_check_branch
          %1126 = sbr.rel (%p1124) target = $region40
        $region39: #{tpu_custom_call.1} parent=35 // pred_region
          %s1128 = ssub.s32 128, 128
          %1129 = vsyncadd %s1120, %s1128
          %s1130 = smul.addr %s18, 128
          %s1131 = scalar_lea.hbm %s4, %s1130
          %s1133 = sshll.u32 %s1123, 4
          %s1134 = int_to_ptr.vmem [resolvable:$true] %s1133
          %1136 = dma.vmem_to_hbm [thread:$0]  %s1134, 128, %s1131, %s1120
        $region40: #{tpu_custom_call.1} parent=35 // pred_fallthru
          _
      $region36: #{tpu_custom_call.1} parent=5 // pred_fallthru
        _
      %p1137 = scmp.le.s32.totalorder 2, %s13
      // Predicated region
      $region41: #{tpu_custom_call.1} parent=5 // pred_check
        %p1138 = pneg %p1137
      $region42: #{tpu_custom_call.1} parent=5 // pred_check_branch
        %1140 = sbr.rel (%p1138) target = $region44
      $region43: #{tpu_custom_call.1} parent=5 // pred_region
        %s1141 = ssub.s32 %s13, 2
        // Predicated region
        $region45: #{tpu_custom_call.1} parent=43 // pred_check
          %p1142 = pneg %p131
        $region46: #{tpu_custom_call.1} parent=43 // pred_check_branch
          %1144 = sbr.rel (%p1142) target = $region48
        $region47: #{tpu_custom_call.1} parent=43 // pred_region
          %s1145 = sand.u32 %s116, 1
          %s1146 = scalar_lea.sflag [#allocation3], %s1145
          %s1147 = sand.u32 %s116, 1
          %s1148 = smul.addr %s1147, 8
          %s1149 = scalar_lea.vmem [#allocation2], %s1148
          %1150 = dma.done %s1146, 128
        $region48: #{tpu_custom_call.1} parent=43 // pred_fallthru
          _
      $region44: #{tpu_custom_call.1} parent=5 // pred_fallthru
        _
    $region6: #{tpu_custom_call.1} parent=1 // loop_footer
      %s17 = sadd.s32 1, %s13
    $region7: #{tpu_custom_call.1} parent=1 // loop_footer_branch
      %12 = sbr.rel target = $region3
    $region8: #{tpu_custom_call.1} parent=1 // loop_exit
      _
    %1151 = vsyncpa [#allocation3], 1
    %s1152 = scalar_lea.sflag [#allocation3], 1
    %1153 = vsyncpa %s1152, 1

</llo_original>
